<compile_context>
chip_gen: v5e
topology: v5e:2x2
jax: 0.10.0
libtpu: 0.0.40
codegen_flags: <defaults>
</compile_context>

<pallas_src>
import functools

import jax
import jax.numpy as jnp
from jax.experimental import pallas as pl
from jax.experimental.pallas import tpu as pltpu


def t5_cross_attn_kernel(h_ref, kv_ref, lnw_ref, wq_ref, wkv_ref, wo_ref,
                         out_ref, *, n_heads, d_kv, eps, compute_dtype):
    Bt, Sqb, D = h_ref.shape          # batch-block, query-block, d_model
    _, Skv, _ = kv_ref.shape
    inner = n_heads * d_kv

    hf = h_ref[...].astype(jnp.float32)      # (Bt, Sqb, D)   residual kept in f32
    kvf = kv_ref[...].astype(jnp.float32)    # (Bt, Skv, D)
    lnw = lnw_ref[0].astype(jnp.float32)     # (D,)

    # --- T5LayerNorm: RMS norm (no mean subtraction), f32 math ---
    var = jnp.mean(hf * hf, axis=-1, keepdims=True)
    normed = hf * jax.lax.rsqrt(var + eps) * lnw[None, None, :]

    # --- Projections: flatten leading dims (layout-free reshape). Q is one
    #     MXU matmul; K and V share a single fused matmul (Wk|Wv). bf16
    #     operands, f32 accumulation. ---
    x2 = normed.reshape(Bt * Sqb, D).astype(compute_dtype)
    kv2 = kvf.reshape(Bt * Skv, D).astype(compute_dtype)
    q = jnp.dot(x2, wq_ref[...], preferred_element_type=jnp.float32)      # (Bt*Sqb, inner)
    kvp = jnp.dot(kv2, wkv_ref[...], preferred_element_type=jnp.float32)  # (Bt*Skv, 2*inner)

    q3 = q.reshape(Bt, Sqb, inner).astype(compute_dtype)
    k3 = kvp[:, :inner].reshape(Bt, Skv, inner).astype(compute_dtype)
    v3 = kvp[:, inner:].reshape(Bt, Skv, inner).astype(compute_dtype)

    # --- Per-head attention with Wo folded in.  No transposes, no concat:
    #     scores/ctx are dot_generals batched over the batch block, and each
    #     head's context is projected straight into the lane-dense (.., D)
    #     f32 accumulator. ---
    attn = jnp.zeros((Bt * Sqb, D), jnp.float32)
    for hh in range(n_heads):
        lo = hh * d_kv
        qh = q3[:, :, lo:lo + d_kv]                       # (Bt, Sqb, d_kv)
        kh = k3[:, :, lo:lo + d_kv]                       # (Bt, Skv, d_kv)
        vh = v3[:, :, lo:lo + d_kv]                       # (Bt, Skv, d_kv)

        # scores = q @ k^T without materializing a transpose: contract d_kv.
        scores = jax.lax.dot_general(
            qh, kh, (((2,), (2,)), ((0,), (0,))),
            preferred_element_type=jnp.float32)           # (Bt, Sqb, Skv)

        # position_bias is zeros (has_relative_attention_bias=False, mask=None),
        # and T5 attention is unscaled, so scores go straight into softmax.
        m = jnp.max(scores, axis=-1, keepdims=True)
        e = jnp.exp(scores - m)
        p = e * pl.reciprocal(jnp.sum(e, axis=-1, keepdims=True), approx=True)
        # dropout on attention weights: identity in eval mode.

        ctx = jax.lax.dot_general(
            p.astype(compute_dtype), vh, (((2,), (1,)), ((0,), (0,))),
            preferred_element_type=jnp.float32)           # (Bt, Sqb, d_kv)

        # Fold output projection: ctx_h @ Wo[h*d_kv:(h+1)*d_kv, :]  -> (.., D)
        attn = attn + jnp.dot(
            ctx.reshape(Bt * Sqb, d_kv).astype(compute_dtype),
            wo_ref[lo:lo + d_kv, :],
            preferred_element_type=jnp.float32)

    # --- Residual add (f32), final dropout is identity in eval mode ---
    out_ref[...] = (hf + attn.reshape(Bt, Sqb, D)).astype(out_ref.dtype)


def t5_layer_cross_attention(hidden, key_value_states, ln_w, wq, wk, wv, wo,
                             *, n_heads, d_kv, eps=1e-6,
                             compute_dtype=jnp.bfloat16,
                             block_b=None, block_sq=None):
    B, Sq, D = hidden.shape
    _, Skv, _ = key_value_states.shape
    inner = n_heads * d_kv
    assert wq.shape == (D, inner) and wk.shape == (D, inner)
    assert wv.shape == (D, inner) and wo.shape == (inner, D)

    # Several batch rows per grid step to amortize per-step pipeline overhead.
    if block_b is None:
        block_b = min(B, 8)
        while B % block_b:
            block_b -= 1
    assert B % block_b == 0

    # Optional query-length tiling for long sequences (K/V projections are
    # recomputed per query block, so only tile Sq when it would blow VMEM).
    if block_sq is None:
        block_sq = Sq
    assert Sq % block_sq == 0

    # bf16 weights halve resident weight VMEM + weight DMA bytes and feed the
    # MXU at full rate; accumulation stays f32 inside the kernel.  K and V
    # projection weights are fused into one matrix so the kernel runs a single
    # MXU matmul for both.
    wq_c = wq.astype(compute_dtype)
    wkv_c = jnp.concatenate([wk, wv], axis=1).astype(compute_dtype)   # (D, 2*inner)
    wo_c = wo.astype(compute_dtype)

    kernel = functools.partial(
        t5_cross_attn_kernel, n_heads=n_heads, d_kv=d_kv, eps=eps,
        compute_dtype=compute_dtype)

    itemsize = jnp.dtype(hidden.dtype).itemsize
    w_itemsize = jnp.dtype(compute_dtype).itemsize
    grid_sq = Sq // block_sq
    flops = (2 * B * Sq * D * inner                   # q projection
             + 4 * grid_sq * B * Skv * D * inner      # fused k,v projection (per q block)
             + 4 * B * Sq * Skv * inner               # scores + ctx
             + 2 * B * Sq * inner * D)                # output projection
    cost = pl.CostEstimate(
        flops=flops,
        transcendentals=B * n_heads * Sq * Skv + B * Sq,
        bytes_accessed=(2 * B * Sq * D + B * Skv * D) * itemsize
                       + 4 * D * inner * w_itemsize + D * 4)

    # TODO(synk): for very long encoder sequences (large Skv) add flash-style
    # Skv tiling with an online softmax; at T5-small/base-ish tiles the full
    # K/V block fits VMEM comfortably.
    layer_output = pl.pallas_call(
        kernel,
        out_shape=jax.ShapeDtypeStruct((B, Sq, D), hidden.dtype),
        grid_spec=pltpu.PrefetchScalarGridSpec(
            num_scalar_prefetch=0,
            grid=(B // block_b, grid_sq),
            in_specs=[
                pl.BlockSpec((block_b, block_sq, D), lambda b, s: (b, s, 0)),  # hidden
                pl.BlockSpec((block_b, Skv, D), lambda b, s: (b, 0, 0)),       # key/value states
                pl.BlockSpec((1, D), lambda b, s: (0, 0)),                     # layer_norm weight
                pl.BlockSpec((D, inner), lambda b, s: (0, 0)),                 # Wq
                pl.BlockSpec((D, 2 * inner), lambda b, s: (0, 0)),             # Wk|Wv fused
                pl.BlockSpec((inner, D), lambda b, s: (0, 0)),                 # Wo
            ],
            out_specs=pl.BlockSpec((block_b, block_sq, D), lambda b, s: (b, s, 0)),
        ),
        compiler_params=pltpu.CompilerParams(
            dimension_semantics=("parallel", "parallel"),
            vmem_limit_bytes=48 * 1024 * 1024),
        cost_estimate=cost,
    )(hidden, key_value_states, ln_w, wq_c, wkv_c, wo_c)

    # position_bias: zeros (no relative bias, no mask); HF returns it in the
    # scores dtype (f32 here).  Glue, not hot path.
    position_bias = jnp.zeros((1, n_heads, Sq, Skv), dtype=jnp.float32)
    return layer_output, position_bias


def _reference(hidden, kv, ln_w, wq, wk, wv, wo, *, n_heads, d_kv, eps=1e-6):
    """Pure-JAX f32 reference of the same forward."""
    B, Sq, D = hidden.shape
    Skv = kv.shape[1]
    var = jnp.mean(hidden * hidden, axis=-1, keepdims=True)
    normed = hidden * jax.lax.rsqrt(var + eps) * ln_w[0][None, None, :]
    q = normed @ wq
    k = kv @ wk
    v = kv @ wv
    q = q.reshape(B, Sq, n_heads, d_kv).transpose(0, 2, 1, 3)
    k = k.reshape(B, Skv, n_heads, d_kv).transpose(0, 2, 1, 3)
    v = v.reshape(B, Skv, n_heads, d_kv).transpose(0, 2, 1, 3)
    scores = jnp.einsum("bhqd,bhkd->bhqk", q, k)
    p = jax.nn.softmax(scores, axis=-1)
    ctx = jnp.einsum("bhqk,bhkd->bhqd", p, v)
    ctx = ctx.transpose(0, 2, 1, 3).reshape(B, Sq, n_heads * d_kv)
    return hidden + ctx @ wo


if __name__ == "__main__":
    # Small config: d_model=32, num_heads=4, d_kv=8 -> inner_dim=32
    B, Sq, Skv, D = 2, 8, 16, 32
    n_heads, d_kv = 4, 8
    inner = n_heads * d_kv

    key = jax.random.PRNGKey(0)
    k0, k1, k2, k3, k4, k5 = jax.random.split(key, 6)
    hidden = jax.random.normal(k0, (B, Sq, D), dtype=jnp.float32)
    kv_states = jax.random.normal(k1, (B, Skv, D), dtype=jnp.float32)
    wq = 0.02 * jax.random.normal(k2, (D, inner), dtype=jnp.float32)
    wk = 0.02 * jax.random.normal(k3, (D, inner), dtype=jnp.float32)
    wv = 0.02 * jax.random.normal(k4, (D, inner), dtype=jnp.float32)
    wo = 0.02 * jax.random.normal(k5, (inner, D), dtype=jnp.float32)
    ln_w = jnp.ones((1, D), dtype=jnp.float32)   # T5LayerNorm init = ones

    ref = _reference(hidden, kv_states, ln_w, wq, wk, wv, wo,
                     n_heads=n_heads, d_kv=d_kv)

    # Strict-precision run (f32 matmul operands) — tight check vs reference.
    out_f32, pb = t5_layer_cross_attention(
        hidden, kv_states, ln_w, wq, wk, wv, wo,
        n_heads=n_heads, d_kv=d_kv, compute_dtype=jnp.float32)
    out_f32 = jax.block_until_ready(out_f32)
    pb = jax.block_until_ready(pb)
    if not jnp.allclose(out_f32, ref, atol=2e-3, rtol=2e-3):
        raise AssertionError("f32-path Pallas output does not match reference")

    # Performance path (bf16 matmul operands, f32 accumulation) — loose check.
    out_bf16, _ = t5_layer_cross_attention(
        hidden, kv_states, ln_w, wq, wk, wv, wo,
        n_heads=n_heads, d_kv=d_kv)  # compute_dtype defaults to bfloat16
    out_bf16 = jax.block_until_ready(out_bf16)
    if not jnp.allclose(out_bf16.astype(jnp.float32), ref, atol=3e-2, rtol=3e-2):
        raise AssertionError("bf16-path Pallas output does not match reference")

    assert out_f32.shape == (B, Sq, D)
    assert out_bf16.shape == (B, Sq, D)
    assert pb.shape == (1, n_heads, Sq, Skv)

    print("KERNEL_OK")
</pallas_src>

<mosaic_0001>
module attributes {stable_mosaic.version = 11 : i64} {
  func.func @t5_cross_attn_kernel(%arg0: i32, %arg1: i32, %arg2: memref<2x8x32xf32, #tpu.memory_space<vmem>>, %arg3: memref<2x16x32xf32, #tpu.memory_space<vmem>>, %arg4: memref<1x32xf32, #tpu.memory_space<vmem>>, %arg5: memref<32x32xf32, #tpu.memory_space<vmem>>, %arg6: memref<32x64xf32, #tpu.memory_space<vmem>>, %arg7: memref<32x32xf32, #tpu.memory_space<vmem>>, %arg8: memref<2x8x32xf32, #tpu.memory_space<vmem>>) attributes {dimension_semantics = [#tpu.dimension_semantics<parallel>, #tpu.dimension_semantics<parallel>], iteration_bounds = array<i64: 1, 1>, scalar_prefetch = 0 : i64, scratch_operands = 0 : i64, tpu.core_type = #tpu.core_type<tc>, window_params = [{transform_indices = @transform_0, window_bounds = array<i64: 2, 8, 32>}, {transform_indices = @transform_1, window_bounds = array<i64: 2, 16, 32>}, {pipeline_mode = #tpu.pipeline_mode<synchronous>, transform_indices = @transform_2, window_bounds = array<i64: 1, 32>}, {pipeline_mode = #tpu.pipeline_mode<synchronous>, transform_indices = @transform_3, window_bounds = array<i64: 32, 32>}, {pipeline_mode = #tpu.pipeline_mode<synchronous>, transform_indices = @transform_4, window_bounds = array<i64: 32, 64>}, {pipeline_mode = #tpu.pipeline_mode<synchronous>, transform_indices = @transform_5, window_bounds = array<i64: 32, 32>}, {transform_indices = @transform_6, window_bounds = array<i64: 2, 8, 32>}]} {
    %c0 = arith.constant 0 : index
    %c0_0 = arith.constant 0 : index
    %c0_1 = arith.constant 0 : index
    %0 = vector.load %arg2[%c0, %c0_0, %c0_1] : memref<2x8x32xf32, #tpu.memory_space<vmem>>, vector<2x8x32xf32>
    %c0_2 = arith.constant 0 : index
    %c0_3 = arith.constant 0 : index
    %c0_4 = arith.constant 0 : index
    %1 = vector.load %arg3[%c0_2, %c0_3, %c0_4] : memref<2x16x32xf32, #tpu.memory_space<vmem>>, vector<2x16x32xf32>
    %c0_5 = arith.constant 0 : index
    %c0_6 = arith.constant 0 : index
    %2 = vector.load %arg4[%c0_5, %c0_6] : memref<1x32xf32, #tpu.memory_space<vmem>>, vector<1x32xf32>
    %3 = vector.shape_cast %2 : vector<1x32xf32> to vector<32xf32>
    %4 = arith.mulf %0, %0 : vector<2x8x32xf32>
    %cst = arith.constant dense<0.000000e+00> : vector<2x8xf32>
    %5 = vector.multi_reduction <add>, %4, %cst [2] : vector<2x8x32xf32> to vector<2x8xf32>
    %6 = vector.shape_cast %5 : vector<2x8xf32> to vector<2x8x1xf32>
    %cst_7 = arith.constant 3.200000e+01 : f32
    %7 = vector.broadcast %cst_7 : f32 to vector<2x8x1xf32>
    %8 = arith.divf %6, %7 : vector<2x8x1xf32>
    %cst_8 = arith.constant 9.99999997E-7 : f32
    %9 = vector.broadcast %cst_8 : f32 to vector<2x8x1xf32>
    %10 = arith.addf %8, %9 : vector<2x8x1xf32>
    %11 = math.rsqrt %10 : vector<2x8x1xf32>
    %12 = vector.broadcast %11 : vector<2x8x1xf32> to vector<2x8x32xf32>
    %13 = arith.mulf %0, %12 : vector<2x8x32xf32>
    %14 = vector.shape_cast %3 : vector<32xf32> to vector<1x1x32xf32>
    %15 = vector.broadcast %14 : vector<1x1x32xf32> to vector<2x8x32xf32>
    %16 = arith.mulf %13, %15 : vector<2x8x32xf32>
    %17 = vector.shape_cast %16 : vector<2x8x32xf32> to vector<16x32xf32>
    %18 = vector.shape_cast %1 : vector<2x16x32xf32> to vector<32x32xf32>
    %c0_9 = arith.constant 0 : index
    %c0_10 = arith.constant 0 : index
    %19 = vector.load %arg5[%c0_9, %c0_10] : memref<32x32xf32, #tpu.memory_space<vmem>>, vector<32x32xf32>
    %cst_11 = arith.constant dense<0.000000e+00> : vector<16x32xf32>
    %20 = tpu.matmul %17, %19, %cst_11 {dimension_numbers = #tpu.dot_dimension_numbers<[1], [0], [0], [1], [0, 0, 1, 1], [], []>} : vector<16x32xf32>, vector<32x32xf32>, vector<16x32xf32> -> vector<16x32xf32>
    %c0_12 = arith.constant 0 : index
    %c0_13 = arith.constant 0 : index
    %21 = vector.load %arg6[%c0_12, %c0_13] : memref<32x64xf32, #tpu.memory_space<vmem>>, vector<32x64xf32>
    %cst_14 = arith.constant dense<0.000000e+00> : vector<32x64xf32>
    %22 = tpu.matmul %18, %21, %cst_14 {dimension_numbers = #tpu.dot_dimension_numbers<[1], [0], [0], [1], [0, 0, 1, 1], [], []>} : vector<32x32xf32>, vector<32x64xf32>, vector<32x64xf32> -> vector<32x64xf32>
    %23 = vector.shape_cast %20 : vector<16x32xf32> to vector<2x8x32xf32>
    %24 = vector.extract_strided_slice %22 {offsets = [0, 0], sizes = [32, 32], strides = [1, 1]} : vector<32x64xf32> to vector<32x32xf32>
    %25 = vector.shape_cast %24 : vector<32x32xf32> to vector<2x16x32xf32>
    %26 = vector.extract_strided_slice %22 {offsets = [0, 32], sizes = [32, 32], strides = [1, 1]} : vector<32x64xf32> to vector<32x32xf32>
    %27 = vector.shape_cast %26 : vector<32x32xf32> to vector<2x16x32xf32>
    %cst_15 = arith.constant 0.000000e+00 : f32
    %28 = vector.broadcast %cst_15 : f32 to vector<16x32xf32>
    %29 = vector.extract_strided_slice %23 {offsets = [0, 0, 0], sizes = [2, 8, 8], strides = [1, 1, 1]} : vector<2x8x32xf32> to vector<2x8x8xf32>
    %30 = vector.extract_strided_slice %25 {offsets = [0, 0, 0], sizes = [2, 16, 8], strides = [1, 1, 1]} : vector<2x16x32xf32> to vector<2x16x8xf32>
    %31 = vector.extract_strided_slice %27 {offsets = [0, 0, 0], sizes = [2, 16, 8], strides = [1, 1, 1]} : vector<2x16x32xf32> to vector<2x16x8xf32>
    %cst_16 = arith.constant dense<0.000000e+00> : vector<2x8x16xf32>
    %32 = tpu.matmul %29, %30, %cst_16 {dimension_numbers = #tpu.dot_dimension_numbers<[2], [2], [1], [1], [0, 0, 0, 1, 1, 1], [0], [0]>} : vector<2x8x8xf32>, vector<2x16x8xf32>, vector<2x8x16xf32> -> vector<2x8x16xf32>
    %cst_17 = arith.constant dense<0xFF800000> : vector<2x8xf32>
    %33 = vector.multi_reduction <maximumf>, %32, %cst_17 [2] : vector<2x8x16xf32> to vector<2x8xf32>
    %34 = vector.shape_cast %33 : vector<2x8xf32> to vector<2x8x1xf32>
    %35 = vector.broadcast %34 : vector<2x8x1xf32> to vector<2x8x16xf32>
    %36 = arith.subf %32, %35 : vector<2x8x16xf32>
    %37 = math.exp %36 : vector<2x8x16xf32>
    %cst_18 = arith.constant dense<0.000000e+00> : vector<2x8xf32>
    %38 = vector.multi_reduction <add>, %37, %cst_18 [2] : vector<2x8x16xf32> to vector<2x8xf32>
    %39 = vector.shape_cast %38 : vector<2x8xf32> to vector<2x8x1xf32>
    %40 = tpu.reciprocal %39 {approx = true} : vector<2x8x1xf32> -> vector<2x8x1xf32>
    %41 = vector.broadcast %40 : vector<2x8x1xf32> to vector<2x8x16xf32>
    %42 = arith.mulf %37, %41 : vector<2x8x16xf32>
    %cst_19 = arith.constant dense<0.000000e+00> : vector<2x8x8xf32>
    %43 = tpu.matmul %42, %31, %cst_19 {dimension_numbers = #tpu.dot_dimension_numbers<[2], [1], [1], [2], [0, 0, 0, 1, 1, 2], [0], [0]>} : vector<2x8x16xf32>, vector<2x16x8xf32>, vector<2x8x8xf32> -> vector<2x8x8xf32>
    %44 = vector.shape_cast %43 : vector<2x8x8xf32> to vector<16x8xf32>
    %c0_20 = arith.constant 0 : index
    %c0_21 = arith.constant 0 : index
    %45 = vector.load %arg7[%c0_20, %c0_21] : memref<32x32xf32, #tpu.memory_space<vmem>>, vector<8x32xf32>
    %cst_22 = arith.constant dense<0.000000e+00> : vector<16x32xf32>
    %46 = tpu.matmul %44, %45, %cst_22 {dimension_numbers = #tpu.dot_dimension_numbers<[1], [0], [0], [1], [0, 0, 1, 1], [], []>} : vector<16x8xf32>, vector<8x32xf32>, vector<16x32xf32> -> vector<16x32xf32>
    %47 = arith.addf %28, %46 : vector<16x32xf32>
    %48 = vector.extract_strided_slice %23 {offsets = [0, 0, 8], sizes = [2, 8, 8], strides = [1, 1, 1]} : vector<2x8x32xf32> to vector<2x8x8xf32>
    %49 = vector.extract_strided_slice %25 {offsets = [0, 0, 8], sizes = [2, 16, 8], strides = [1, 1, 1]} : vector<2x16x32xf32> to vector<2x16x8xf32>
    %50 = vector.extract_strided_slice %27 {offsets = [0, 0, 8], sizes = [2, 16, 8], strides = [1, 1, 1]} : vector<2x16x32xf32> to vector<2x16x8xf32>
    %cst_23 = arith.constant dense<0.000000e+00> : vector<2x8x16xf32>
    %51 = tpu.matmul %48, %49, %cst_23 {dimension_numbers = #tpu.dot_dimension_numbers<[2], [2], [1], [1], [0, 0, 0, 1, 1, 1], [0], [0]>} : vector<2x8x8xf32>, vector<2x16x8xf32>, vector<2x8x16xf32> -> vector<2x8x16xf32>
    %cst_24 = arith.constant dense<0xFF800000> : vector<2x8xf32>
    %52 = vector.multi_reduction <maximumf>, %51, %cst_24 [2] : vector<2x8x16xf32> to vector<2x8xf32>
    %53 = vector.shape_cast %52 : vector<2x8xf32> to vector<2x8x1xf32>
    %54 = vector.broadcast %53 : vector<2x8x1xf32> to vector<2x8x16xf32>
    %55 = arith.subf %51, %54 : vector<2x8x16xf32>
    %56 = math.exp %55 : vector<2x8x16xf32>
    %cst_25 = arith.constant dense<0.000000e+00> : vector<2x8xf32>
    %57 = vector.multi_reduction <add>, %56, %cst_25 [2] : vector<2x8x16xf32> to vector<2x8xf32>
    %58 = vector.shape_cast %57 : vector<2x8xf32> to vector<2x8x1xf32>
    %59 = tpu.reciprocal %58 {approx = true} : vector<2x8x1xf32> -> vector<2x8x1xf32>
    %60 = vector.broadcast %59 : vector<2x8x1xf32> to vector<2x8x16xf32>
    %61 = arith.mulf %56, %60 : vector<2x8x16xf32>
    %cst_26 = arith.constant dense<0.000000e+00> : vector<2x8x8xf32>
    %62 = tpu.matmul %61, %50, %cst_26 {dimension_numbers = #tpu.dot_dimension_numbers<[2], [1], [1], [2], [0, 0, 0, 1, 1, 2], [0], [0]>} : vector<2x8x16xf32>, vector<2x16x8xf32>, vector<2x8x8xf32> -> vector<2x8x8xf32>
    %63 = vector.shape_cast %62 : vector<2x8x8xf32> to vector<16x8xf32>
    %c8 = arith.constant 8 : index
    %c0_27 = arith.constant 0 : index
    %64 = vector.load %arg7[%c8, %c0_27] : memref<32x32xf32, #tpu.memory_space<vmem>>, vector<8x32xf32>
    %cst_28 = arith.constant dense<0.000000e+00> : vector<16x32xf32>
    %65 = tpu.matmul %63, %64, %cst_28 {dimension_numbers = #tpu.dot_dimension_numbers<[1], [0], [0], [1], [0, 0, 1, 1], [], []>} : vector<16x8xf32>, vector<8x32xf32>, vector<16x32xf32> -> vector<16x32xf32>
    %66 = arith.addf %47, %65 : vector<16x32xf32>
    %67 = vector.extract_strided_slice %23 {offsets = [0, 0, 16], sizes = [2, 8, 8], strides = [1, 1, 1]} : vector<2x8x32xf32> to vector<2x8x8xf32>
    %68 = vector.extract_strided_slice %25 {offsets = [0, 0, 16], sizes = [2, 16, 8], strides = [1, 1, 1]} : vector<2x16x32xf32> to vector<2x16x8xf32>
    %69 = vector.extract_strided_slice %27 {offsets = [0, 0, 16], sizes = [2, 16, 8], strides = [1, 1, 1]} : vector<2x16x32xf32> to vector<2x16x8xf32>
    %cst_29 = arith.constant dense<0.000000e+00> : vector<2x8x16xf32>
    %70 = tpu.matmul %67, %68, %cst_29 {dimension_numbers = #tpu.dot_dimension_numbers<[2], [2], [1], [1], [0, 0, 0, 1, 1, 1], [0], [0]>} : vector<2x8x8xf32>, vector<2x16x8xf32>, vector<2x8x16xf32> -> vector<2x8x16xf32>
    %cst_30 = arith.constant dense<0xFF800000> : vector<2x8xf32>
    %71 = vector.multi_reduction <maximumf>, %70, %cst_30 [2] : vector<2x8x16xf32> to vector<2x8xf32>
    %72 = vector.shape_cast %71 : vector<2x8xf32> to vector<2x8x1xf32>
    %73 = vector.broadcast %72 : vector<2x8x1xf32> to vector<2x8x16xf32>
    %74 = arith.subf %70, %73 : vector<2x8x16xf32>
    %75 = math.exp %74 : vector<2x8x16xf32>
    %cst_31 = arith.constant dense<0.000000e+00> : vector<2x8xf32>
    %76 = vector.multi_reduction <add>, %75, %cst_31 [2] : vector<2x8x16xf32> to vector<2x8xf32>
    %77 = vector.shape_cast %76 : vector<2x8xf32> to vector<2x8x1xf32>
    %78 = tpu.reciprocal %77 {approx = true} : vector<2x8x1xf32> -> vector<2x8x1xf32>
    %79 = vector.broadcast %78 : vector<2x8x1xf32> to vector<2x8x16xf32>
    %80 = arith.mulf %75, %79 : vector<2x8x16xf32>
    %cst_32 = arith.constant dense<0.000000e+00> : vector<2x8x8xf32>
    %81 = tpu.matmul %80, %69, %cst_32 {dimension_numbers = #tpu.dot_dimension_numbers<[2], [1], [1], [2], [0, 0, 0, 1, 1, 2], [0], [0]>} : vector<2x8x16xf32>, vector<2x16x8xf32>, vector<2x8x8xf32> -> vector<2x8x8xf32>
    %82 = vector.shape_cast %81 : vector<2x8x8xf32> to vector<16x8xf32>
    %c16 = arith.constant 16 : index
    %c0_33 = arith.constant 0 : index
    %83 = vector.load %arg7[%c16, %c0_33] : memref<32x32xf32, #tpu.memory_space<vmem>>, vector<8x32xf32>
    %cst_34 = arith.constant dense<0.000000e+00> : vector<16x32xf32>
    %84 = tpu.matmul %82, %83, %cst_34 {dimension_numbers = #tpu.dot_dimension_numbers<[1], [0], [0], [1], [0, 0, 1, 1], [], []>} : vector<16x8xf32>, vector<8x32xf32>, vector<16x32xf32> -> vector<16x32xf32>
    %85 = arith.addf %66, %84 : vector<16x32xf32>
    %86 = vector.extract_strided_slice %23 {offsets = [0, 0, 24], sizes = [2, 8, 8], strides = [1, 1, 1]} : vector<2x8x32xf32> to vector<2x8x8xf32>
    %87 = vector.extract_strided_slice %25 {offsets = [0, 0, 24], sizes = [2, 16, 8], strides = [1, 1, 1]} : vector<2x16x32xf32> to vector<2x16x8xf32>
    %88 = vector.extract_strided_slice %27 {offsets = [0, 0, 24], sizes = [2, 16, 8], strides = [1, 1, 1]} : vector<2x16x32xf32> to vector<2x16x8xf32>
    %cst_35 = arith.constant dense<0.000000e+00> : vector<2x8x16xf32>
    %89 = tpu.matmul %86, %87, %cst_35 {dimension_numbers = #tpu.dot_dimension_numbers<[2], [2], [1], [1], [0, 0, 0, 1, 1, 1], [0], [0]>} : vector<2x8x8xf32>, vector<2x16x8xf32>, vector<2x8x16xf32> -> vector<2x8x16xf32>
    %cst_36 = arith.constant dense<0xFF800000> : vector<2x8xf32>
    %90 = vector.multi_reduction <maximumf>, %89, %cst_36 [2] : vector<2x8x16xf32> to vector<2x8xf32>
    %91 = vector.shape_cast %90 : vector<2x8xf32> to vector<2x8x1xf32>
    %92 = vector.broadcast %91 : vector<2x8x1xf32> to vector<2x8x16xf32>
    %93 = arith.subf %89, %92 : vector<2x8x16xf32>
    %94 = math.exp %93 : vector<2x8x16xf32>
    %cst_37 = arith.constant dense<0.000000e+00> : vector<2x8xf32>
    %95 = vector.multi_reduction <add>, %94, %cst_37 [2] : vector<2x8x16xf32> to vector<2x8xf32>
    %96 = vector.shape_cast %95 : vector<2x8xf32> to vector<2x8x1xf32>
    %97 = tpu.reciprocal %96 {approx = true} : vector<2x8x1xf32> -> vector<2x8x1xf32>
    %98 = vector.broadcast %97 : vector<2x8x1xf32> to vector<2x8x16xf32>
    %99 = arith.mulf %94, %98 : vector<2x8x16xf32>
    %cst_38 = arith.constant dense<0.000000e+00> : vector<2x8x8xf32>
    %100 = tpu.matmul %99, %88, %cst_38 {dimension_numbers = #tpu.dot_dimension_numbers<[2], [1], [1], [2], [0, 0, 0, 1, 1, 2], [0], [0]>} : vector<2x8x16xf32>, vector<2x16x8xf32>, vector<2x8x8xf32> -> vector<2x8x8xf32>
    %101 = vector.shape_cast %100 : vector<2x8x8xf32> to vector<16x8xf32>
    %c24 = arith.constant 24 : index
    %c0_39 = arith.constant 0 : index
    %102 = vector.load %arg7[%c24, %c0_39] : memref<32x32xf32, #tpu.memory_space<vmem>>, vector<8x32xf32>
    %cst_40 = arith.constant dense<0.000000e+00> : vector<16x32xf32>
    %103 = tpu.matmul %101, %102, %cst_40 {dimension_numbers = #tpu.dot_dimension_numbers<[1], [0], [0], [1], [0, 0, 1, 1], [], []>} : vector<16x8xf32>, vector<8x32xf32>, vector<16x32xf32> -> vector<16x32xf32>
    %104 = arith.addf %85, %103 : vector<16x32xf32>
    %105 = vector.shape_cast %104 : vector<16x32xf32> to vector<2x8x32xf32>
    %106 = arith.addf %0, %105 : vector<2x8x32xf32>
    %c0_41 = arith.constant 0 : index
    %c0_42 = arith.constant 0 : index
    %c0_43 = arith.constant 0 : index
    %107 = vector.load %arg8[%c0_41, %c0_42, %c0_43] : memref<2x8x32xf32, #tpu.memory_space<vmem>>, vector<2x8x32xf32>
    tpu.vector_store %arg8[%c0_41, %c0_42, %c0_43], %106 {strides = array<i32>} : memref<2x8x32xf32, #tpu.memory_space<vmem>>, vector<2x8x32xf32>,
    return
  }
  func.func @transform_0(%arg0: i32, %arg1: i32) -> (i32, i32, i32) {
    %c0_i32 = arith.constant 0 : i32
    %c0_i32_0 = arith.constant 0 : i32
    return %arg0, %arg1, %c0_i32 : i32, i32, i32
  }
  func.func @transform_1(%arg0: i32, %arg1: i32) -> (i32, i32, i32) {
    %c0_i32 = arith.constant 0 : i32
    %c0_i32_0 = arith.constant 0 : i32
    %c0_i32_1 = arith.constant 0 : i32
    return %arg0, %c0_i32, %c0_i32_0 : i32, i32, i32
  }
  func.func @transform_2(%arg0: i32, %arg1: i32) -> (i32, i32) {
    %c0_i32 = arith.constant 0 : i32
    %c0_i32_0 = arith.constant 0 : i32
    %c0_i32_1 = arith.constant 0 : i32
    return %c0_i32, %c0_i32_0 : i32, i32
  }
  func.func @transform_3(%arg0: i32, %arg1: i32) -> (i32, i32) {
    %c0_i32 = arith.constant 0 : i32
    %c0_i32_0 = arith.constant 0 : i32
    %c0_i32_1 = arith.constant 0 : i32
    return %c0_i32, %c0_i32_0 : i32, i32
  }
  func.func @transform_4(%arg0: i32, %arg1: i32) -> (i32, i32) {
    %c0_i32 = arith.constant 0 : i32
    %c0_i32_0 = arith.constant 0 : i32
    %c0_i32_1 = arith.constant 0 : i32
    return %c0_i32, %c0_i32_0 : i32, i32
  }
  func.func @transform_5(%arg0: i32, %arg1: i32) -> (i32, i32) {
    %c0_i32 = arith.constant 0 : i32
    %c0_i32_0 = arith.constant 0 : i32
    %c0_i32_1 = arith.constant 0 : i32
    return %c0_i32, %c0_i32_0 : i32, i32
  }
  func.func @transform_6(%arg0: i32, %arg1: i32) -> (i32, i32, i32) {
    %c0_i32 = arith.constant 0 : i32
    %c0_i32_0 = arith.constant 0 : i32
    return %arg0, %arg1, %c0_i32 : i32, i32, i32
  }
}

</mosaic_0001>

<llo_original>
// kernel: tpu_custom_call.1
$region0: #{tpu_custom_call.1}
  #allocation0 [shape = 'u32[]', space=smem, size = 0x4, offset = 0x4, fixed_abs, tag = 'smem constant byte address 0x4 - core index']
  #allocation1 [shape = 'u32[72,128]{1,0:T(1,128)}', space=vmem, size = 0x9000, scoped, tag = 'internal scratch']
  %s0 = inlined_call_operand.hbm [shape: f32[2,8,32], index: 0, kind: input, shape index: {}]
  %s1 = inlined_call_operand.hbm [shape: f32[2,16,32], index: 1, kind: input, shape index: {}]
  %s2 = inlined_call_operand.vmem [shape: f32[1,32], index: 2, kind: input, shape index: {}]
  %s3 = inlined_call_operand.hbm [shape: f32[32,32], index: 3, kind: input, shape index: {}]
  %s4 = inlined_call_operand.hbm [shape: f32[32,64], index: 4, kind: input, shape index: {}]
  %s5 = inlined_call_operand.hbm [shape: f32[32,32], index: 5, kind: input, shape index: {}]
  %s6 = inlined_call_operand.hbm [shape: f32[2,8,32], index: 6, kind: output, shape index: {}]
  %s7 = sld [smem:[#allocation0]]
  $region54: #{tpu_custom_call.1} parent=0
    _
  %s9 = ssub.s32 1, %s7
  %s10 = scalar_select 0, %s9, %s7
  $region1: #{tpu_custom_call.1} parent=0
    #allocation2 [shape = 'u8[8192]{0}', space=vmem, size = 0x2000, scoped, tag = 'input window, operand 0, single buffered']
    #allocation3 [shape = 's32[1]{0}', space=sflag, size = 0x4, scoped, tag = 'scoped memory for tpu_custom_call.1']
    #allocation4 [shape = 's32[1]{0}', space=sflag, size = 0x4, scoped, tag = 'scoped memory for tpu_custom_call.1']
    #allocation5 [shape = 'u8[16384]{0}', space=vmem, size = 0x4000, scoped, tag = 'input window, operand 1, single buffered']
    #allocation6 [shape = 's32[1]{0}', space=sflag, size = 0x4, scoped, tag = 'scoped memory for tpu_custom_call.1']
    #allocation7 [shape = 'u8[16384]{0}', space=vmem, size = 0x4000, scoped, tag = 'input window, operand 3, single buffered']
    #allocation8 [shape = 'u8[16384]{0}', space=vmem, size = 0x4000, scoped, tag = 'input window, operand 4, single buffered']
    #allocation9 [shape = 's32[1]{0}', space=sflag, size = 0x4, scoped, tag = 'scoped memory for tpu_custom_call.1']
    #allocation10 [shape = 'u8[16384]{0}', space=vmem, size = 0x4000, scoped, tag = 'input window, operand 5, single buffered']
    #allocation11 [shape = 'u8[8192]{0}', space=vmem, size = 0x2000, scoped, tag = 'output window, operand 0, single buffered']
    %11 = vsyncpa [#allocation3], 0
    %12 = vsyncpa [#allocation6], 0
    %13 = vsyncpa [#allocation9], 0
    %14 = vsyncpa [#allocation4], 0
    // Predicated region
    $region2: #{tpu_custom_call.1} parent=1 // pred_check
      _
    $region3: #{tpu_custom_call.1} parent=1 // pred_check_branch
      %16 = sbr.rel (0) target = $region5
    $region4: #{tpu_custom_call.1} parent=1 // pred_region
      %18 = vsyncadd [#allocation3], 0
      %s19 = sshll.u32 %s0, 4
      %s20 = int_to_ptr.hbm [resolvable:$true] %s19
      %s21 = sshll.u32 [#allocation2], 4
      %s22 = int_to_ptr.vmem [resolvable:$true] %s21
      %27 = dma.hbm_to_vmem [thread:$0]  %s20, 256, %s22, [#allocation3], 128, 128, 8
    $region5: #{tpu_custom_call.1} parent=1 // pred_fallthru
      _
    // Predicated region
    $region6: #{tpu_custom_call.1} parent=1 // pred_check
      _
    $region7: #{tpu_custom_call.1} parent=1 // pred_check_branch
      %29 = sbr.rel (0) target = $region9
    $region8: #{tpu_custom_call.1} parent=1 // pred_region
      %31 = vsyncadd [#allocation6], 0
      %s32 = sshll.u32 %s1, 4
      %s33 = int_to_ptr.hbm [resolvable:$true] %s32
      %s34 = sshll.u32 [#allocation5], 4
      %s35 = int_to_ptr.vmem [resolvable:$true] %s34
      %40 = dma.hbm_to_vmem [thread:$0]  %s33, 512, %s35, [#allocation6], 128, 128, 8
    $region9: #{tpu_custom_call.1} parent=1 // pred_fallthru
      _
    // Predicated region
    $region10: #{tpu_custom_call.1} parent=1 // pred_check
      _
    $region11: #{tpu_custom_call.1} parent=1 // pred_check_branch
      %42 = sbr.rel (0) target = $region13
    $region12: #{tpu_custom_call.1} parent=1 // pred_region
      _
    $region13: #{tpu_custom_call.1} parent=1 // pred_fallthru
      _
    // Predicated region
    $region14: #{tpu_custom_call.1} parent=1 // pred_check
      _
    $region15: #{tpu_custom_call.1} parent=1 // pred_check_branch
      %44 = sbr.rel (0) target = $region17
    $region16: #{tpu_custom_call.1} parent=1 // pred_region
      %46 = vsyncadd [#allocation6], 0
      %s47 = sshll.u32 %s3, 4
      %s48 = int_to_ptr.hbm [resolvable:$true] %s47
      %s49 = sshll.u32 [#allocation7], 4
      %s50 = int_to_ptr.vmem [resolvable:$true] %s49
      %55 = dma.hbm_to_vmem [thread:$0]  %s48, 512, %s50, [#allocation6], 128, 128, 8
    $region17: #{tpu_custom_call.1} parent=1 // pred_fallthru
      _
    // Predicated region
    $region18: #{tpu_custom_call.1} parent=1 // pred_check
      _
    $region19: #{tpu_custom_call.1} parent=1 // pred_check_branch
      %57 = sbr.rel (0) target = $region21
    $region20: #{tpu_custom_call.1} parent=1 // pred_region
      %59 = vsyncadd [#allocation9], 0
      %s60 = sshll.u32 %s4, 4
      %s61 = int_to_ptr.hbm [resolvable:$true] %s60
      %s62 = sshll.u32 [#allocation8], 4
      %s63 = int_to_ptr.vmem [resolvable:$true] %s62
      %68 = dma.hbm_to_vmem [thread:$0]  %s61, 512, %s63, [#allocation9], 128, 128, 8
    $region21: #{tpu_custom_call.1} parent=1 // pred_fallthru
      _
    // Predicated region
    $region22: #{tpu_custom_call.1} parent=1 // pred_check
      _
    $region23: #{tpu_custom_call.1} parent=1 // pred_check_branch
      %70 = sbr.rel (0) target = $region25
    $region24: #{tpu_custom_call.1} parent=1 // pred_region
      %72 = vsyncadd [#allocation9], 0
      %s73 = sshll.u32 %s5, 4
      %s74 = int_to_ptr.hbm [resolvable:$true] %s73
      %s75 = sshll.u32 [#allocation10], 4
      %s76 = int_to_ptr.vmem [resolvable:$true] %s75
      %81 = dma.hbm_to_vmem [thread:$0]  %s74, 512, %s76, [#allocation9], 128, 128, 8
    $region25: #{tpu_custom_call.1} parent=1 // pred_fallthru
      _
    // Predicated region
    $region26: #{tpu_custom_call.1} parent=1 // pred_check
      _
    $region27: #{tpu_custom_call.1} parent=1 // pred_check_branch
      %83 = sbr.rel (0) target = $region29
    $region28: #{tpu_custom_call.1} parent=1 // pred_region
      %85 = dma.done [#allocation3], 256
    $region29: #{tpu_custom_call.1} parent=1 // pred_fallthru
      _
    // Predicated region
    $region30: #{tpu_custom_call.1} parent=1 // pred_check
      _
    $region31: #{tpu_custom_call.1} parent=1 // pred_check_branch
      %87 = sbr.rel (0) target = $region33
    $region32: #{tpu_custom_call.1} parent=1 // pred_region
      %89 = dma.done [#allocation6], 512
    $region33: #{tpu_custom_call.1} parent=1 // pred_fallthru
      _
    // Predicated region
    $region34: #{tpu_custom_call.1} parent=1 // pred_check
      _
    $region35: #{tpu_custom_call.1} parent=1 // pred_check_branch
      %91 = sbr.rel (0) target = $region37
    $region36: #{tpu_custom_call.1} parent=1 // pred_region
      %93 = dma.done [#allocation6], 512
    $region37: #{tpu_custom_call.1} parent=1 // pred_fallthru
      _
    // Predicated region
    $region38: #{tpu_custom_call.1} parent=1 // pred_check
      _
    $region39: #{tpu_custom_call.1} parent=1 // pred_check_branch
      %95 = sbr.rel (0) target = $region41
    $region40: #{tpu_custom_call.1} parent=1 // pred_region
      %97 = dma.done [#allocation9], 512
    $region41: #{tpu_custom_call.1} parent=1 // pred_fallthru
      _
    // Predicated region
    $region42: #{tpu_custom_call.1} parent=1 // pred_check
      _
    $region43: #{tpu_custom_call.1} parent=1 // pred_check_branch
      %99 = sbr.rel (0) target = $region45
    $region44: #{tpu_custom_call.1} parent=1 // pred_region
      %101 = dma.done [#allocation9], 512
    $region45: #{tpu_custom_call.1} parent=1 // pred_fallthru
      _
    %v102 = vld [vmem:[#allocation2] sm:$0xff]
    %v103 = vld [vmem:[#allocation2 + $0x8] sm:$0xff]
    %v104 = vld [vmem:[#allocation5] sm:$0xff]
    %v105 = vld [vmem:[#allocation5 + $0x8] sm:$0xff]
    %v106 = vld [vmem:[#allocation5 + $0x10] sm:$0xff]
    %v107 = vld [vmem:[#allocation5 + $0x18] sm:$0xff]
    %v108 = vld [vmem:[%s2] sm:$0x1]
    %v109 = vmul.f32 %v102, %v102
    %v110 = vmul.f32 %v103, %v103
    %vm111 = vcmask 261120
    %v112 = vsel %vm111, %v109, 0.0
    %113 = vadd.xlane.f32.xlu0 %v112
    %v114 = vpop.xlane.xlu0 %113
    %v115 = vsel %vm111, %v110, 0.0
    %116 = vadd.xlane.f32.xlu0 %v115
    %v117 = vpop.xlane.xlu0 %116
    %v118 = vrcp.pop 32.0
    %v119 = vmul.f32 32.0, %v118
    %v120 = vsub.f32 1.0, %v119
    %v121 = vmul.f32 %v118, %v120
    %v122 = vadd.f32 %v118, %v121
    %vm123 = vweird.f32 %v118
    %v124 = vsel %vm123, %v118, %v122
    %v125 = vmul.f32 %v114, %v124
    %v126 = vmul.f32 %v117, %v124
    %v127 = vadd.f32 %v125, 1e-06
    %v128 = vadd.f32 %v126, 1e-06
    %v129 = vrsqrt.pop %v127
    %v130 = vmul.f32 %v129, %v127
    %v131 = vmul.f32 %v130, %v129
    %v132 = vmul.f32 0.5, %v131
    %v133 = vsub.f32 1.5, %v132
    %v134 = vmul.f32 %v129, %v133
    %vm135 = vweird.f32 %v127
    %vm136 = vweird.f32 %v129
    %vm137 = vmor %vm135, %vm136
    %v138 = vsel %vm137, %v129, %v134
    %v139 = vrsqrt.pop %v128
    %v140 = vmul.f32 %v139, %v128
    %v141 = vmul.f32 %v140, %v139
    %v142 = vmul.f32 0.5, %v141
    %v143 = vsub.f32 1.5, %v142
    %v144 = vmul.f32 %v139, %v143
    %vm145 = vweird.f32 %v128
    %vm146 = vweird.f32 %v139
    %vm147 = vmor %vm145, %vm146
    %v148 = vsel %vm147, %v139, %v144
    %v149 = vmul.f32 %v102, %v138
    %v150 = vmul.f32 %v103, %v148
    %v152 = vperm.slane %v108, 0
    %v154 = vmul.f32 %v149, %v152
    %v155 = vmul.f32 %v150, %v152
    %v156 = vld [vmem:[#allocation7] sm:$0xff]
    %v157 = vld [vmem:[#allocation7 + $0x8] sm:$0xff]
    %v158 = vld [vmem:[#allocation7 + $0x10] sm:$0xff]
    %v159 = vld [vmem:[#allocation7 + $0x18] sm:$0xff]
    %v161 = vsel %vm111, %v154, 0
    %v164 = vsel %vm111, %v155, 0
    %166 = vmatpush.msra.mxu0 0.0
    %167 = vmatpush.msra.mxu0 0.0
    %168 = vmatpush.msra.mxu0 0.0
    %169 = vmatpush.msra.mxu0 0.0
    %170 = vmatpush.msra.mxu0 0.0
    %171 = vmatpush.msra.mxu0 0.0
    %172 = vmatpush.msra.mxu0 0.0
    %173 = vmatpush.msra.mxu0 0.0
    %174 = vmatpush.msra.mxu0 0.0
    %175 = vmatpush.msra.mxu0 0.0
    %176 = vmatpush.msra.mxu0 0.0
    %177 = vmatpush.msra.mxu0 0.0
    %178 = vmatpush.msra.mxu0 %v159
    %179 = vmatpush.msra.mxu0 %v158
    %180 = vmatpush.msra.mxu0 %v157
    %181 = vmatpush.msra.mxu0 %v156
    %182 = vmatmul.f32.gmra.mxu0 %v161
    %v183 = vpop.f32.mrf.mxu0
    %v184 = vadd.f32 0.0, %v183
    %185 = vmatmul.f32.gmra.mxu0 %v164
    %v186 = vpop.f32.mrf.mxu0
    %v187 = vadd.f32 0.0, %v186
    %188 = vdwg.mxu0
    %v189 = vld [vmem:[#allocation8] sm:$0xff]
    %v190 = vld [vmem:[#allocation8 + $0x8] sm:$0xff]
    %v191 = vld [vmem:[#allocation8 + $0x10] sm:$0xff]
    %v192 = vld [vmem:[#allocation8 + $0x18] sm:$0xff]
    %v194 = vsel %vm111, %v104, 0
    %v197 = vsel %vm111, %v105, 0
    %v200 = vsel %vm111, %v106, 0
    %v203 = vsel %vm111, %v107, 0
    %205 = vmatpush.msra.mxu0 0.0
    %206 = vmatpush.msra.mxu0 0.0
    %207 = vmatpush.msra.mxu0 0.0
    %208 = vmatpush.msra.mxu0 0.0
    %209 = vmatpush.msra.mxu0 0.0
    %210 = vmatpush.msra.mxu0 0.0
    %211 = vmatpush.msra.mxu0 0.0
    %212 = vmatpush.msra.mxu0 0.0
    %213 = vmatpush.msra.mxu0 0.0
    %214 = vmatpush.msra.mxu0 0.0
    %215 = vmatpush.msra.mxu0 0.0
    %216 = vmatpush.msra.mxu0 0.0
    %217 = vmatpush.msra.mxu0 %v192
    %218 = vmatpush.msra.mxu0 %v191
    %219 = vmatpush.msra.mxu0 %v190
    %220 = vmatpush.msra.mxu0 %v189
    %221 = vmatmul.f32.gmra.mxu0 %v194
    %v222 = vpop.f32.mrf.mxu0
    %v223 = vadd.f32 0.0, %v222
    %224 = vmatmul.f32.gmra.mxu0 %v197
    %v225 = vpop.f32.mrf.mxu0
    %v226 = vadd.f32 0.0, %v225
    %227 = vmatmul.f32.gmra.mxu0 %v200
    %v228 = vpop.f32.mrf.mxu0
    %v229 = vadd.f32 0.0, %v228
    %230 = vmatmul.f32.gmra.mxu0 %v203
    %v231 = vpop.f32.mrf.mxu0
    %v232 = vadd.f32 0.0, %v231
    %233 = vdwg.mxu0
    %vm234 = vcmask 64512
    %v236 = vsel %vm234, %v184, 0
    %v239 = vsel %vm234, %v223, 0
    %v242 = vsel %vm234, %v226, 0
    %244 = vmatpush.xpose.msra.mxu0 0.0
    %245 = vmatpush.xpose.msra.mxu0 0.0
    %246 = vmatpush.xpose.msra.mxu0 0.0
    %247 = vmatpush.xpose.msra.mxu0 0.0
    %248 = vmatpush.xpose.msra.mxu0 0.0
    %249 = vmatpush.xpose.msra.mxu0 0.0
    %250 = vmatpush.xpose.msra.mxu0 0.0
    %251 = vmatpush.xpose.msra.mxu0 0.0
    %252 = vmatpush.xpose.msra.mxu0 0.0
    %253 = vmatpush.xpose.msra.mxu0 0.0
    %254 = vmatpush.xpose.msra.mxu0 0.0
    %255 = vmatpush.xpose.msra.mxu0 0.0
    %256 = vmatpush.xpose.msra.mxu0 0.0
    %257 = vmatpush.xpose.msra.mxu0 0.0
    %258 = vmatpush.xpose.msra.mxu0 %v242
    %259 = vmatpush.xpose.msra.mxu0 %v239
    %260 = vmatmul.f32.gmra.mxu0 %v236
    %v261 = vpop.f32.mrf.mxu0
    %v262 = vadd.f32 0.0, %v261
    %263 = vdwg.mxu0
    %v265 = vsel %vm234, %v187, 0
    %v268 = vsel %vm234, %v229, 0
    %v271 = vsel %vm234, %v232, 0
    %273 = vmatpush.xpose.msra.mxu0 0.0
    %274 = vmatpush.xpose.msra.mxu0 0.0
    %275 = vmatpush.xpose.msra.mxu0 0.0
    %276 = vmatpush.xpose.msra.mxu0 0.0
    %277 = vmatpush.xpose.msra.mxu0 0.0
    %278 = vmatpush.xpose.msra.mxu0 0.0
    %279 = vmatpush.xpose.msra.mxu0 0.0
    %280 = vmatpush.xpose.msra.mxu0 0.0
    %281 = vmatpush.xpose.msra.mxu0 0.0
    %282 = vmatpush.xpose.msra.mxu0 0.0
    %283 = vmatpush.xpose.msra.mxu0 0.0
    %284 = vmatpush.xpose.msra.mxu0 0.0
    %285 = vmatpush.xpose.msra.mxu0 0.0
    %286 = vmatpush.xpose.msra.mxu0 0.0
    %287 = vmatpush.xpose.msra.mxu0 %v271
    %288 = vmatpush.xpose.msra.mxu0 %v268
    %289 = vmatmul.f32.gmra.mxu0 %v265
    %v290 = vpop.f32.mrf.mxu0
    %v291 = vadd.f32 0.0, %v290
    %292 = vdwg.mxu0
    %vm293 = vcmask 130048
    %v294 = vsel %vm293, %v262, -inf
    %295 = vmax.xlane.f32.xlu0 %v294
    %v296 = vpop.xlane.xlu0 %295
    %v297 = vsel %vm293, %v291, -inf
    %298 = vmax.xlane.f32.xlu0 %v297
    %v299 = vpop.xlane.xlu0 %298
    %v300 = vsub.f32 %v262, %v296
    %v301 = vsub.f32 %v291, %v299
    %v302 = vmul.f32 %v300, 1.442695
    %v303 = vpow.pop %v302
    %v304 = vmul.f32 %v301, 1.442695
    %v305 = vpow.pop %v304
    %v306 = vsel %vm293, %v303, 0.0
    %307 = vadd.xlane.f32.xlu0 %v306
    %v308 = vpop.xlane.xlu0 %307
    %v309 = vsel %vm293, %v305, 0.0
    %310 = vadd.xlane.f32.xlu0 %v309
    %v311 = vpop.xlane.xlu0 %310
    %v312 = vrcp.pop %v308
    %v313 = vrcp.pop %v311
    %v314 = vmul.f32 %v303, %v312
    %v315 = vmul.f32 %v305, %v313
    %316 = vrot.lane.b32.xlu0 %v223, 96
    %v317 = vpop.permute.xlu0 %316
    %318 = vrot.lane.b32.xlu0 %v226, 96
    %v319 = vpop.permute.xlu0 %318
    %v323 = vsel %vm293, %v314, 0
    %325 = vmatpush.msra.mxu0 0.0
    %326 = vmatpush.msra.mxu0 0.0
    %327 = vmatpush.msra.mxu0 0.0
    %328 = vmatpush.msra.mxu0 0.0
    %329 = vmatpush.msra.mxu0 0.0
    %330 = vmatpush.msra.mxu0 0.0
    %331 = vmatpush.msra.mxu0 0.0
    %332 = vmatpush.msra.mxu0 0.0
    %333 = vmatpush.msra.mxu0 0.0
    %334 = vmatpush.msra.mxu0 0.0
    %335 = vmatpush.msra.mxu0 0.0
    %336 = vmatpush.msra.mxu0 0.0
    %337 = vmatpush.msra.mxu0 0.0
    %338 = vmatpush.msra.mxu0 0.0
    %339 = vmatpush.msra.mxu0 %v319
    %340 = vmatpush.msra.mxu0 %v317
    %341 = vmatmul.f32.gmra.mxu0 %v323
    %v342 = vpop.f32.mrf.mxu0
    %v343 = vadd.f32 0.0, %v342
    %344 = vdwg.mxu0
    %345 = vrot.lane.b32.xlu0 %v229, 96
    %v346 = vpop.permute.xlu0 %345
    %347 = vrot.lane.b32.xlu0 %v232, 96
    %v348 = vpop.permute.xlu0 %347
    %v352 = vsel %vm293, %v315, 0
    %354 = vmatpush.msra.mxu0 0.0
    %355 = vmatpush.msra.mxu0 0.0
    %356 = vmatpush.msra.mxu0 0.0
    %357 = vmatpush.msra.mxu0 0.0
    %358 = vmatpush.msra.mxu0 0.0
    %359 = vmatpush.msra.mxu0 0.0
    %360 = vmatpush.msra.mxu0 0.0
    %361 = vmatpush.msra.mxu0 0.0
    %362 = vmatpush.msra.mxu0 0.0
    %363 = vmatpush.msra.mxu0 0.0
    %364 = vmatpush.msra.mxu0 0.0
    %365 = vmatpush.msra.mxu0 0.0
    %366 = vmatpush.msra.mxu0 0.0
    %367 = vmatpush.msra.mxu0 0.0
    %368 = vmatpush.msra.mxu0 %v348
    %369 = vmatpush.msra.mxu0 %v346
    %370 = vmatmul.f32.gmra.mxu0 %v352
    %v371 = vpop.f32.mrf.mxu0
    %v372 = vadd.f32 0.0, %v371
    %373 = vdwg.mxu0
    %v374 = vld [vmem:[#allocation10] sm:$0xff]
    %375 = vrot.lane.b32.xlu0 %v184, 120
    %v376 = vpop.permute.xlu0 %375
    %377 = vrot.lane.b32.xlu0 %v223, 120
    %v378 = vpop.permute.xlu0 %377
    %379 = vrot.lane.b32.xlu0 %v226, 120
    %v380 = vpop.permute.xlu0 %379
    %v381 = vsel %vm234, %v376, 0
    %v383 = vsel %vm234, %v378, 0
    %v385 = vsel %vm234, %v380, 0
    %387 = vmatpush.xpose.msra.mxu0 0.0
    %388 = vmatpush.xpose.msra.mxu0 0.0
    %389 = vmatpush.xpose.msra.mxu0 0.0
    %390 = vmatpush.xpose.msra.mxu0 0.0
    %391 = vmatpush.xpose.msra.mxu0 0.0
    %392 = vmatpush.xpose.msra.mxu0 0.0
    %393 = vmatpush.xpose.msra.mxu0 0.0
    %394 = vmatpush.xpose.msra.mxu0 0.0
    %395 = vmatpush.xpose.msra.mxu0 0.0
    %396 = vmatpush.xpose.msra.mxu0 0.0
    %397 = vmatpush.xpose.msra.mxu0 0.0
    %398 = vmatpush.xpose.msra.mxu0 0.0
    %399 = vmatpush.xpose.msra.mxu0 0.0
    %400 = vmatpush.xpose.msra.mxu0 0.0
    %401 = vmatpush.xpose.msra.mxu0 %v385
    %402 = vmatpush.xpose.msra.mxu0 %v383
    %403 = vmatmul.f32.gmra.mxu0 %v381
    %v404 = vpop.f32.mrf.mxu0
    %v405 = vadd.f32 0.0, %v404
    %406 = vdwg.mxu0
    %407 = vrot.lane.b32.xlu0 %v187, 120
    %v408 = vpop.permute.xlu0 %407
    %409 = vrot.lane.b32.xlu0 %v229, 120
    %v410 = vpop.permute.xlu0 %409
    %411 = vrot.lane.b32.xlu0 %v232, 120
    %v412 = vpop.permute.xlu0 %411
    %v413 = vsel %vm234, %v408, 0
    %v415 = vsel %vm234, %v410, 0
    %v417 = vsel %vm234, %v412, 0
    %419 = vmatpush.xpose.msra.mxu0 0.0
    %420 = vmatpush.xpose.msra.mxu0 0.0
    %421 = vmatpush.xpose.msra.mxu0 0.0
    %422 = vmatpush.xpose.msra.mxu0 0.0
    %423 = vmatpush.xpose.msra.mxu0 0.0
    %424 = vmatpush.xpose.msra.mxu0 0.0
    %425 = vmatpush.xpose.msra.mxu0 0.0
    %426 = vmatpush.xpose.msra.mxu0 0.0
    %427 = vmatpush.xpose.msra.mxu0 0.0
    %428 = vmatpush.xpose.msra.mxu0 0.0
    %429 = vmatpush.xpose.msra.mxu0 0.0
    %430 = vmatpush.xpose.msra.mxu0 0.0
    %431 = vmatpush.xpose.msra.mxu0 0.0
    %432 = vmatpush.xpose.msra.mxu0 0.0
    %433 = vmatpush.xpose.msra.mxu0 %v417
    %434 = vmatpush.xpose.msra.mxu0 %v415
    %435 = vmatmul.f32.gmra.mxu0 %v413
    %v436 = vpop.f32.mrf.mxu0
    %v437 = vadd.f32 0.0, %v436
    %438 = vdwg.mxu0
    %v439 = vsel %vm293, %v405, -inf
    %440 = vmax.xlane.f32.xlu0 %v439
    %v441 = vpop.xlane.xlu0 %440
    %v442 = vsel %vm293, %v437, -inf
    %443 = vmax.xlane.f32.xlu0 %v442
    %v444 = vpop.xlane.xlu0 %443
    %v445 = vsub.f32 %v405, %v441
    %v446 = vsub.f32 %v437, %v444
    %v447 = vmul.f32 %v445, 1.442695
    %v448 = vpow.pop %v447
    %v449 = vmul.f32 %v446, 1.442695
    %v450 = vpow.pop %v449
    %v451 = vsel %vm293, %v448, 0.0
    %452 = vadd.xlane.f32.xlu0 %v451
    %v453 = vpop.xlane.xlu0 %452
    %v454 = vsel %vm293, %v450, 0.0
    %455 = vadd.xlane.f32.xlu0 %v454
    %v456 = vpop.xlane.xlu0 %455
    %v457 = vrcp.pop %v453
    %v458 = vrcp.pop %v456
    %v459 = vmul.f32 %v448, %v457
    %v460 = vmul.f32 %v450, %v458
    %461 = vrot.lane.b32.xlu0 %v223, 88
    %v462 = vpop.permute.xlu0 %461
    %463 = vrot.lane.b32.xlu0 %v226, 88
    %v464 = vpop.permute.xlu0 %463
    %v468 = vsel %vm293, %v459, 0
    %470 = vmatpush.msra.mxu0 0.0
    %471 = vmatpush.msra.mxu0 0.0
    %472 = vmatpush.msra.mxu0 0.0
    %473 = vmatpush.msra.mxu0 0.0
    %474 = vmatpush.msra.mxu0 0.0
    %475 = vmatpush.msra.mxu0 0.0
    %476 = vmatpush.msra.mxu0 0.0
    %477 = vmatpush.msra.mxu0 0.0
    %478 = vmatpush.msra.mxu0 0.0
    %479 = vmatpush.msra.mxu0 0.0
    %480 = vmatpush.msra.mxu0 0.0
    %481 = vmatpush.msra.mxu0 0.0
    %482 = vmatpush.msra.mxu0 0.0
    %483 = vmatpush.msra.mxu0 0.0
    %484 = vmatpush.msra.mxu0 %v464
    %485 = vmatpush.msra.mxu0 %v462
    %486 = vmatmul.f32.gmra.mxu0 %v468
    %v487 = vpop.f32.mrf.mxu0
    %v488 = vadd.f32 0.0, %v487
    %489 = vdwg.mxu0
    %490 = vrot.lane.b32.xlu0 %v229, 88
    %v491 = vpop.permute.xlu0 %490
    %492 = vrot.lane.b32.xlu0 %v232, 88
    %v493 = vpop.permute.xlu0 %492
    %v497 = vsel %vm293, %v460, 0
    %499 = vmatpush.msra.mxu0 0.0
    %500 = vmatpush.msra.mxu0 0.0
    %501 = vmatpush.msra.mxu0 0.0
    %502 = vmatpush.msra.mxu0 0.0
    %503 = vmatpush.msra.mxu0 0.0
    %504 = vmatpush.msra.mxu0 0.0
    %505 = vmatpush.msra.mxu0 0.0
    %506 = vmatpush.msra.mxu0 0.0
    %507 = vmatpush.msra.mxu0 0.0
    %508 = vmatpush.msra.mxu0 0.0
    %509 = vmatpush.msra.mxu0 0.0
    %510 = vmatpush.msra.mxu0 0.0
    %511 = vmatpush.msra.mxu0 0.0
    %512 = vmatpush.msra.mxu0 0.0
    %513 = vmatpush.msra.mxu0 %v493
    %514 = vmatpush.msra.mxu0 %v491
    %515 = vmatmul.f32.gmra.mxu0 %v497
    %v516 = vpop.f32.mrf.mxu0
    %v517 = vadd.f32 0.0, %v516
    %518 = vdwg.mxu0
    %v519 = vld [vmem:[#allocation10 + $0x8] sm:$0xff]
    %v521 = vsel %vm234, %v488, 0
    %v524 = vsel %vm234, %v517, 0
    %526 = vmatpush.msra.mxu0 0.0
    %527 = vmatpush.msra.mxu0 0.0
    %528 = vmatpush.msra.mxu0 0.0
    %529 = vmatpush.msra.mxu0 0.0
    %530 = vmatpush.msra.mxu0 0.0
    %531 = vmatpush.msra.mxu0 0.0
    %532 = vmatpush.msra.mxu0 0.0
    %533 = vmatpush.msra.mxu0 0.0
    %534 = vmatpush.msra.mxu0 0.0
    %535 = vmatpush.msra.mxu0 0.0
    %536 = vmatpush.msra.mxu0 0.0
    %537 = vmatpush.msra.mxu0 0.0
    %538 = vmatpush.msra.mxu0 0.0
    %539 = vmatpush.msra.mxu0 0.0
    %540 = vmatpush.msra.mxu0 0.0
    %541 = vmatpush.msra.mxu0 %v519
    %542 = vmatmul.f32.gmra.mxu0 %v521
    %v543 = vpop.f32.mrf.mxu0
    %v544 = vadd.f32 0.0, %v543
    %545 = vmatmul.f32.gmra.mxu0 %v524
    %v546 = vpop.f32.mrf.mxu0
    %v547 = vadd.f32 0.0, %v546
    %548 = vdwg.mxu0
    %v550 = vsel %vm234, %v343, 0
    %v553 = vsel %vm234, %v372, 0
    %555 = vmatpush.msra.mxu0 0.0
    %556 = vmatpush.msra.mxu0 0.0
    %557 = vmatpush.msra.mxu0 0.0
    %558 = vmatpush.msra.mxu0 0.0
    %559 = vmatpush.msra.mxu0 0.0
    %560 = vmatpush.msra.mxu0 0.0
    %561 = vmatpush.msra.mxu0 0.0
    %562 = vmatpush.msra.mxu0 0.0
    %563 = vmatpush.msra.mxu0 0.0
    %564 = vmatpush.msra.mxu0 0.0
    %565 = vmatpush.msra.mxu0 0.0
    %566 = vmatpush.msra.mxu0 0.0
    %567 = vmatpush.msra.mxu0 0.0
    %568 = vmatpush.msra.mxu0 0.0
    %569 = vmatpush.msra.mxu0 0.0
    %570 = vmatpush.msra.mxu0 %v374
    %571 = vmatmul.f32.gmra.mxu0 %v550
    %v572 = vpop.f32.mrf.mxu0
    %v573 = vadd.f32 %v544, %v572
    %574 = vmatmul.f32.gmra.mxu0 %v553
    %v575 = vpop.f32.mrf.mxu0
    %v576 = vadd.f32 %v547, %v575
    %577 = vdwg.mxu0
    %578 = vrot.lane.b32.xlu0 %v184, 112
    %v579 = vpop.permute.xlu0 %578
    %580 = vrot.lane.b32.xlu0 %v223, 112
    %v581 = vpop.permute.xlu0 %580
    %582 = vrot.lane.b32.xlu0 %v226, 112
    %v583 = vpop.permute.xlu0 %582
    %v584 = vsel %vm234, %v579, 0
    %v586 = vsel %vm234, %v581, 0
    %v588 = vsel %vm234, %v583, 0
    %590 = vmatpush.xpose.msra.mxu0 0.0
    %591 = vmatpush.xpose.msra.mxu0 0.0
    %592 = vmatpush.xpose.msra.mxu0 0.0
    %593 = vmatpush.xpose.msra.mxu0 0.0
    %594 = vmatpush.xpose.msra.mxu0 0.0
    %595 = vmatpush.xpose.msra.mxu0 0.0
    %596 = vmatpush.xpose.msra.mxu0 0.0
    %597 = vmatpush.xpose.msra.mxu0 0.0
    %598 = vmatpush.xpose.msra.mxu0 0.0
    %599 = vmatpush.xpose.msra.mxu0 0.0
    %600 = vmatpush.xpose.msra.mxu0 0.0
    %601 = vmatpush.xpose.msra.mxu0 0.0
    %602 = vmatpush.xpose.msra.mxu0 0.0
    %603 = vmatpush.xpose.msra.mxu0 0.0
    %604 = vmatpush.xpose.msra.mxu0 %v588
    %605 = vmatpush.xpose.msra.mxu0 %v586
    %606 = vmatmul.f32.gmra.mxu0 %v584
    %v607 = vpop.f32.mrf.mxu0
    %v608 = vadd.f32 0.0, %v607
    %609 = vdwg.mxu0
    %610 = vrot.lane.b32.xlu0 %v187, 112
    %v611 = vpop.permute.xlu0 %610
    %612 = vrot.lane.b32.xlu0 %v229, 112
    %v613 = vpop.permute.xlu0 %612
    %614 = vrot.lane.b32.xlu0 %v232, 112
    %v615 = vpop.permute.xlu0 %614
    %v616 = vsel %vm234, %v611, 0
    %v618 = vsel %vm234, %v613, 0
    %v620 = vsel %vm234, %v615, 0
    %622 = vmatpush.xpose.msra.mxu0 0.0
    %623 = vmatpush.xpose.msra.mxu0 0.0
    %624 = vmatpush.xpose.msra.mxu0 0.0
    %625 = vmatpush.xpose.msra.mxu0 0.0
    %626 = vmatpush.xpose.msra.mxu0 0.0
    %627 = vmatpush.xpose.msra.mxu0 0.0
    %628 = vmatpush.xpose.msra.mxu0 0.0
    %629 = vmatpush.xpose.msra.mxu0 0.0
    %630 = vmatpush.xpose.msra.mxu0 0.0
    %631 = vmatpush.xpose.msra.mxu0 0.0
    %632 = vmatpush.xpose.msra.mxu0 0.0
    %633 = vmatpush.xpose.msra.mxu0 0.0
    %634 = vmatpush.xpose.msra.mxu0 0.0
    %635 = vmatpush.xpose.msra.mxu0 0.0
    %636 = vmatpush.xpose.msra.mxu0 %v620
    %637 = vmatpush.xpose.msra.mxu0 %v618
    %638 = vmatmul.f32.gmra.mxu0 %v616
    %v639 = vpop.f32.mrf.mxu0
    %v640 = vadd.f32 0.0, %v639
    %641 = vdwg.mxu0
    %v642 = vsel %vm293, %v608, -inf
    %643 = vmax.xlane.f32.xlu0 %v642
    %v644 = vpop.xlane.xlu0 %643
    %v645 = vsel %vm293, %v640, -inf
    %646 = vmax.xlane.f32.xlu0 %v645
    %v647 = vpop.xlane.xlu0 %646
    %v648 = vsub.f32 %v608, %v644
    %v649 = vsub.f32 %v640, %v647
    %v650 = vmul.f32 %v648, 1.442695
    %v651 = vpow.pop %v650
    %v652 = vmul.f32 %v649, 1.442695
    %v653 = vpow.pop %v652
    %v654 = vsel %vm293, %v651, 0.0
    %655 = vadd.xlane.f32.xlu0 %v654
    %v656 = vpop.xlane.xlu0 %655
    %v657 = vsel %vm293, %v653, 0.0
    %658 = vadd.xlane.f32.xlu0 %v657
    %v659 = vpop.xlane.xlu0 %658
    %v660 = vrcp.pop %v656
    %v661 = vrcp.pop %v659
    %v662 = vmul.f32 %v651, %v660
    %v663 = vmul.f32 %v653, %v661
    %664 = vrot.lane.b32.xlu0 %v223, 80
    %v665 = vpop.permute.xlu0 %664
    %666 = vrot.lane.b32.xlu0 %v226, 80
    %v667 = vpop.permute.xlu0 %666
    %v671 = vsel %vm293, %v662, 0
    %673 = vmatpush.msra.mxu0 0.0
    %674 = vmatpush.msra.mxu0 0.0
    %675 = vmatpush.msra.mxu0 0.0
    %676 = vmatpush.msra.mxu0 0.0
    %677 = vmatpush.msra.mxu0 0.0
    %678 = vmatpush.msra.mxu0 0.0
    %679 = vmatpush.msra.mxu0 0.0
    %680 = vmatpush.msra.mxu0 0.0
    %681 = vmatpush.msra.mxu0 0.0
    %682 = vmatpush.msra.mxu0 0.0
    %683 = vmatpush.msra.mxu0 0.0
    %684 = vmatpush.msra.mxu0 0.0
    %685 = vmatpush.msra.mxu0 0.0
    %686 = vmatpush.msra.mxu0 0.0
    %687 = vmatpush.msra.mxu0 %v667
    %688 = vmatpush.msra.mxu0 %v665
    %689 = vmatmul.f32.gmra.mxu0 %v671
    %v690 = vpop.f32.mrf.mxu0
    %v691 = vadd.f32 0.0, %v690
    %692 = vdwg.mxu0
    %693 = vrot.lane.b32.xlu0 %v229, 80
    %v694 = vpop.permute.xlu0 %693
    %695 = vrot.lane.b32.xlu0 %v232, 80
    %v696 = vpop.permute.xlu0 %695
    %v700 = vsel %vm293, %v663, 0
    %702 = vmatpush.msra.mxu0 0.0
    %703 = vmatpush.msra.mxu0 0.0
    %704 = vmatpush.msra.mxu0 0.0
    %705 = vmatpush.msra.mxu0 0.0
    %706 = vmatpush.msra.mxu0 0.0
    %707 = vmatpush.msra.mxu0 0.0
    %708 = vmatpush.msra.mxu0 0.0
    %709 = vmatpush.msra.mxu0 0.0
    %710 = vmatpush.msra.mxu0 0.0
    %711 = vmatpush.msra.mxu0 0.0
    %712 = vmatpush.msra.mxu0 0.0
    %713 = vmatpush.msra.mxu0 0.0
    %714 = vmatpush.msra.mxu0 0.0
    %715 = vmatpush.msra.mxu0 0.0
    %716 = vmatpush.msra.mxu0 %v696
    %717 = vmatpush.msra.mxu0 %v694
    %718 = vmatmul.f32.gmra.mxu0 %v700
    %v719 = vpop.f32.mrf.mxu0
    %v720 = vadd.f32 0.0, %v719
    %721 = vdwg.mxu0
    %v722 = vld [vmem:[#allocation10 + $0x10] sm:$0xff]
    %v724 = vsel %vm234, %v691, 0
    %v727 = vsel %vm234, %v720, 0
    %729 = vmatpush.msra.mxu0 0.0
    %730 = vmatpush.msra.mxu0 0.0
    %731 = vmatpush.msra.mxu0 0.0
    %732 = vmatpush.msra.mxu0 0.0
    %733 = vmatpush.msra.mxu0 0.0
    %734 = vmatpush.msra.mxu0 0.0
    %735 = vmatpush.msra.mxu0 0.0
    %736 = vmatpush.msra.mxu0 0.0
    %737 = vmatpush.msra.mxu0 0.0
    %738 = vmatpush.msra.mxu0 0.0
    %739 = vmatpush.msra.mxu0 0.0
    %740 = vmatpush.msra.mxu0 0.0
    %741 = vmatpush.msra.mxu0 0.0
    %742 = vmatpush.msra.mxu0 0.0
    %743 = vmatpush.msra.mxu0 0.0
    %744 = vmatpush.msra.mxu0 %v722
    %745 = vmatmul.f32.gmra.mxu0 %v724
    %v746 = vpop.f32.mrf.mxu0
    %v747 = vadd.f32 0.0, %v746
    %748 = vmatmul.f32.gmra.mxu0 %v727
    %v749 = vpop.f32.mrf.mxu0
    %v750 = vadd.f32 0.0, %v749
    %751 = vdwg.mxu0
    %v752 = vadd.f32 %v573, %v747
    %v753 = vadd.f32 %v576, %v750
    %754 = vrot.lane.b32.xlu0 %v184, 104
    %v755 = vpop.permute.xlu0 %754
    %756 = vrot.lane.b32.xlu0 %v223, 104
    %v757 = vpop.permute.xlu0 %756
    %758 = vrot.lane.b32.xlu0 %v226, 104
    %v759 = vpop.permute.xlu0 %758
    %v760 = vsel %vm234, %v755, 0
    %v762 = vsel %vm234, %v757, 0
    %v764 = vsel %vm234, %v759, 0
    %766 = vmatpush.xpose.msra.mxu0 0.0
    %767 = vmatpush.xpose.msra.mxu0 0.0
    %768 = vmatpush.xpose.msra.mxu0 0.0
    %769 = vmatpush.xpose.msra.mxu0 0.0
    %770 = vmatpush.xpose.msra.mxu0 0.0
    %771 = vmatpush.xpose.msra.mxu0 0.0
    %772 = vmatpush.xpose.msra.mxu0 0.0
    %773 = vmatpush.xpose.msra.mxu0 0.0
    %774 = vmatpush.xpose.msra.mxu0 0.0
    %775 = vmatpush.xpose.msra.mxu0 0.0
    %776 = vmatpush.xpose.msra.mxu0 0.0
    %777 = vmatpush.xpose.msra.mxu0 0.0
    %778 = vmatpush.xpose.msra.mxu0 0.0
    %779 = vmatpush.xpose.msra.mxu0 0.0
    %780 = vmatpush.xpose.msra.mxu0 %v764
    %781 = vmatpush.xpose.msra.mxu0 %v762
    %782 = vmatmul.f32.gmra.mxu0 %v760
    %v783 = vpop.f32.mrf.mxu0
    %v784 = vadd.f32 0.0, %v783
    %785 = vdwg.mxu0
    %786 = vrot.lane.b32.xlu0 %v187, 104
    %v787 = vpop.permute.xlu0 %786
    %788 = vrot.lane.b32.xlu0 %v229, 104
    %v789 = vpop.permute.xlu0 %788
    %790 = vrot.lane.b32.xlu0 %v232, 104
    %v791 = vpop.permute.xlu0 %790
    %v792 = vsel %vm234, %v787, 0
    %v794 = vsel %vm234, %v789, 0
    %v796 = vsel %vm234, %v791, 0
    %798 = vmatpush.xpose.msra.mxu0 0.0
    %799 = vmatpush.xpose.msra.mxu0 0.0
    %800 = vmatpush.xpose.msra.mxu0 0.0
    %801 = vmatpush.xpose.msra.mxu0 0.0
    %802 = vmatpush.xpose.msra.mxu0 0.0
    %803 = vmatpush.xpose.msra.mxu0 0.0
    %804 = vmatpush.xpose.msra.mxu0 0.0
    %805 = vmatpush.xpose.msra.mxu0 0.0
    %806 = vmatpush.xpose.msra.mxu0 0.0
    %807 = vmatpush.xpose.msra.mxu0 0.0
    %808 = vmatpush.xpose.msra.mxu0 0.0
    %809 = vmatpush.xpose.msra.mxu0 0.0
    %810 = vmatpush.xpose.msra.mxu0 0.0
    %811 = vmatpush.xpose.msra.mxu0 0.0
    %812 = vmatpush.xpose.msra.mxu0 %v796
    %813 = vmatpush.xpose.msra.mxu0 %v794
    %814 = vmatmul.f32.gmra.mxu0 %v792
    %v815 = vpop.f32.mrf.mxu0
    %v816 = vadd.f32 0.0, %v815
    %817 = vdwg.mxu0
    %v818 = vsel %vm293, %v784, -inf
    %819 = vmax.xlane.f32.xlu0 %v818
    %v820 = vpop.xlane.xlu0 %819
    %v821 = vsel %vm293, %v816, -inf
    %822 = vmax.xlane.f32.xlu0 %v821
    %v823 = vpop.xlane.xlu0 %822
    %v824 = vsub.f32 %v784, %v820
    %v825 = vsub.f32 %v816, %v823
    %v826 = vmul.f32 %v824, 1.442695
    %v827 = vpow.pop %v826
    %v828 = vmul.f32 %v825, 1.442695
    %v829 = vpow.pop %v828
    %v830 = vsel %vm293, %v827, 0.0
    %831 = vadd.xlane.f32.xlu0 %v830
    %v832 = vpop.xlane.xlu0 %831
    %v833 = vsel %vm293, %v829, 0.0
    %834 = vadd.xlane.f32.xlu0 %v833
    %v835 = vpop.xlane.xlu0 %834
    %v836 = vrcp.pop %v832
    %v837 = vrcp.pop %v835
    %v838 = vmul.f32 %v827, %v836
    %v839 = vmul.f32 %v829, %v837
    %840 = vrot.lane.b32.xlu0 %v223, 72
    %v841 = vpop.permute.xlu0 %840
    %842 = vrot.lane.b32.xlu0 %v226, 72
    %v843 = vpop.permute.xlu0 %842
    %v847 = vsel %vm293, %v838, 0
    %849 = vmatpush.msra.mxu0 0.0
    %850 = vmatpush.msra.mxu0 0.0
    %851 = vmatpush.msra.mxu0 0.0
    %852 = vmatpush.msra.mxu0 0.0
    %853 = vmatpush.msra.mxu0 0.0
    %854 = vmatpush.msra.mxu0 0.0
    %855 = vmatpush.msra.mxu0 0.0
    %856 = vmatpush.msra.mxu0 0.0
    %857 = vmatpush.msra.mxu0 0.0
    %858 = vmatpush.msra.mxu0 0.0
    %859 = vmatpush.msra.mxu0 0.0
    %860 = vmatpush.msra.mxu0 0.0
    %861 = vmatpush.msra.mxu0 0.0
    %862 = vmatpush.msra.mxu0 0.0
    %863 = vmatpush.msra.mxu0 %v843
    %864 = vmatpush.msra.mxu0 %v841
    %865 = vmatmul.f32.gmra.mxu0 %v847
    %v866 = vpop.f32.mrf.mxu0
    %v867 = vadd.f32 0.0, %v866
    %868 = vdwg.mxu0
    %869 = vrot.lane.b32.xlu0 %v229, 72
    %v870 = vpop.permute.xlu0 %869
    %871 = vrot.lane.b32.xlu0 %v232, 72
    %v872 = vpop.permute.xlu0 %871
    %v876 = vsel %vm293, %v839, 0
    %878 = vmatpush.msra.mxu0 0.0
    %879 = vmatpush.msra.mxu0 0.0
    %880 = vmatpush.msra.mxu0 0.0
    %881 = vmatpush.msra.mxu0 0.0
    %882 = vmatpush.msra.mxu0 0.0
    %883 = vmatpush.msra.mxu0 0.0
    %884 = vmatpush.msra.mxu0 0.0
    %885 = vmatpush.msra.mxu0 0.0
    %886 = vmatpush.msra.mxu0 0.0
    %887 = vmatpush.msra.mxu0 0.0
    %888 = vmatpush.msra.mxu0 0.0
    %889 = vmatpush.msra.mxu0 0.0
    %890 = vmatpush.msra.mxu0 0.0
    %891 = vmatpush.msra.mxu0 0.0
    %892 = vmatpush.msra.mxu0 %v872
    %893 = vmatpush.msra.mxu0 %v870
    %894 = vmatmul.f32.gmra.mxu0 %v876
    %v895 = vpop.f32.mrf.mxu0
    %v896 = vadd.f32 0.0, %v895
    %897 = vdwg.mxu0
    %v898 = vld [vmem:[#allocation10 + $0x18] sm:$0xff]
    %v900 = vsel %vm234, %v867, 0
    %v903 = vsel %vm234, %v896, 0
    %905 = vmatpush.msra.mxu0 0.0
    %906 = vmatpush.msra.mxu0 0.0
    %907 = vmatpush.msra.mxu0 0.0
    %908 = vmatpush.msra.mxu0 0.0
    %909 = vmatpush.msra.mxu0 0.0
    %910 = vmatpush.msra.mxu0 0.0
    %911 = vmatpush.msra.mxu0 0.0
    %912 = vmatpush.msra.mxu0 0.0
    %913 = vmatpush.msra.mxu0 0.0
    %914 = vmatpush.msra.mxu0 0.0
    %915 = vmatpush.msra.mxu0 0.0
    %916 = vmatpush.msra.mxu0 0.0
    %917 = vmatpush.msra.mxu0 0.0
    %918 = vmatpush.msra.mxu0 0.0
    %919 = vmatpush.msra.mxu0 0.0
    %920 = vmatpush.msra.mxu0 %v898
    %921 = vmatmul.f32.gmra.mxu0 %v900
    %v922 = vpop.f32.mrf.mxu0
    %v923 = vadd.f32 0.0, %v922
    %924 = vmatmul.f32.gmra.mxu0 %v903
    %v925 = vpop.f32.mrf.mxu0
    %v926 = vadd.f32 0.0, %v925
    %927 = vdwg.mxu0
    %v928 = vadd.f32 %v752, %v923
    %v929 = vadd.f32 %v753, %v926
    %v930 = vadd.f32 %v102, %v928
    %v931 = vadd.f32 %v103, %v929
    %932 = vst.msk [vmem:[#allocation11] sm:$0xff] %vm111, %v930
    %933 = vst.msk [vmem:[#allocation11 + $0x8] sm:$0xff] %vm111, %v931
    // Predicated region
    $region46: #{tpu_custom_call.1} parent=1 // pred_check
      _
    $region47: #{tpu_custom_call.1} parent=1 // pred_check_branch
      %935 = sbr.rel (0) target = $region49
    $region48: #{tpu_custom_call.1} parent=1 // pred_region
      %937 = vsyncadd [#allocation4], 0
      %s938 = sshll.u32 [#allocation11], 4
      %s939 = int_to_ptr.vmem [resolvable:$true] %s938
      %s940 = sshll.u32 %s6, 4
      %s941 = int_to_ptr.hbm [resolvable:$true] %s940
      %946 = dma.vmem_to_hbm [thread:$0]  %s939, 256, %s941, [#allocation4], 128, 128, 8
    $region49: #{tpu_custom_call.1} parent=1 // pred_fallthru
      _
    // Predicated region
    $region50: #{tpu_custom_call.1} parent=1 // pred_check
      _
    $region51: #{tpu_custom_call.1} parent=1 // pred_check_branch
      %948 = sbr.rel (0) target = $region53
    $region52: #{tpu_custom_call.1} parent=1 // pred_region
      %950 = dma.done [#allocation4], 256
    $region53: #{tpu_custom_call.1} parent=1 // pred_fallthru
      _
    %951 = vsyncpa [#allocation3], 1
    %952 = vsyncpa [#allocation6], 1
    %953 = vsyncpa [#allocation9], 1
    %954 = vsyncpa [#allocation4], 1

</llo_original>
